<compile_context>
chip_gen: v7x
topology: tpu7x:2x2x1
jax: 0.10.0
libtpu: 0.0.40
codegen_flags: <defaults>
</compile_context>

<pallas_src>
import functools

import jax
import jax.numpy as jnp
from jax.experimental import pallas as pl
from jax.experimental.pallas import tpu as pltpu


def _round_up(x, m):
    return (x + m - 1) // m * m


def _choose_tile_d(d, tile_n, p_item, t_item, *, cap_elems=16384,
                   budget_bytes=24 << 20):
    """Pick the D tile: big enough to amortize per-step overhead, small enough
    for double-buffered inputs to fit VMEM, and (when possible) dividing
    round_up(d, 128) so at most one 128-lane chunk ever needs masking."""
    d_pad = _round_up(d, 128)
    per_col = 2 * tile_n * (p_item + t_item)          # double-buffered inputs
    max_by_vmem = max(128, (budget_bytes // per_col) // 128 * 128)
    cap = min(cap_elems, max_by_vmem)
    if d_pad <= cap:
        return d_pad                                   # single D step
    n128 = d_pad // 128
    best = 0
    for m in range(cap // 128, 0, -1):
        if n128 % m == 0:
            best = m * 128
            break
    if best * 4 >= cap:                                # divisor not absurdly small
        return best
    return cap


def _dice_loss_kernel(pred_ref, target_ref, loss_ref, num_acc, den_acc,
                      *, d, tile_d, epsilon, loss_weight, binary_target):
    k = pl.program_id(1)  # reduction (D) axis, innermost

    @pl.when(k == 0)
    def _():
        num_acc[...] = jnp.zeros_like(num_acc)
        den_acc[...] = jnp.zeros_like(den_acc)

    tile_n = num_acc.shape[0]
    n_steps = (d + tile_d - 1) // tile_d
    last_start = (n_steps - 1) * tile_d                # column offset of last D step

    num_part = jnp.zeros((tile_n, 128), jnp.float32)
    den_part = jnp.zeros((tile_n, 128), jnp.float32)
    for c in range(tile_d // 128):
        sl = slice(c * 128, (c + 1) * 128)
        x = pred_ref[:, sl].astype(jnp.float32)
        # sigmoid(x) == 0.5 * tanh(0.5 * x) + 0.5 : one EUP op instead of two.
        pc = 0.5 * jnp.tanh(0.5 * x) + 0.5
        tc = target_ref[:, sl].astype(jnp.float32)
        # Only chunks that can straddle/overrun d on the last D step carry a
        # mask (statically decided); the mask is all-true on earlier steps, so
        # it is correct everywhere and selects also stop NaN propagation from
        # the out-of-range garbage columns of the partial last block.
        if last_start + (c + 1) * 128 > d:
            col = (jax.lax.broadcasted_iota(jnp.int32, (tile_n, 128), 1)
                   + k * tile_d + c * 128)
            valid = col < d
            pc = jnp.where(valid, pc, 0.0)
            tc = jnp.where(valid, tc, 0.0)
        num_part = num_part + pc * tc
        den_part = den_part + pc * pc + (tc if binary_target else tc * tc)
    num_acc[...] += num_part
    den_acc[...] += den_part

    @pl.when(k == pl.num_programs(1) - 1)
    def _():
        # Single cross-lane (XLU) reduction per accumulator, once per row block.
        num = jnp.sum(num_acc[...], axis=1, keepdims=True)
        den = jnp.sum(den_acc[...], axis=1, keepdims=True)
        dice = 2.0 * num / (den + epsilon)
        loss_ref[...] = ((1.0 - dice) * loss_weight).astype(loss_ref.dtype)


def dice_loss(pred, target, weight=None, avg_factor=None, *,
              reduction='mean', loss_weight=1.0, epsilon=0.001,
              binary_target=False, tile_n=None, tile_d=None):
    """Pallas DiceLoss forward. pred/target: (N, D); weight: optional (N,)."""
    assert reduction in ('mean', 'sum')
    assert pred.shape == target.shape and pred.ndim == 2
    n, d = pred.shape

    p_item = jnp.dtype(pred.dtype).itemsize
    t_item = jnp.dtype(target.dtype).itemsize

    if tile_n is None:
        # 32 keeps the unrolled-loop partials at ~8 live vregs (no spills) and
        # gives the v7x megacore >=2 "parallel" row blocks whenever N > 32.
        tile_n = min(_round_up(n, 8), 32)
    if tile_d is None:
        tile_d = _choose_tile_d(d, tile_n, p_item, t_item)
    assert tile_n % 8 == 0 and tile_d % 128 == 0

    grid = (pl.cdiv(n, tile_n), pl.cdiv(d, tile_d))

    # VMEM need: double-buffered inputs + 2 accumulators + (padded) output.
    vmem_need = (2 * tile_n * tile_d * (p_item + t_item)
                 + 2 * tile_n * 128 * 4
                 + 2 * _round_up(tile_n, 8) * 128 * 4)
    # Derive the limit from the actual need (never clamp below it).
    vmem_limit = int(min(max(32 << 20, vmem_need + (8 << 20)), 120 << 20))

    kernel = functools.partial(
        _dice_loss_kernel, d=d, tile_d=tile_d,
        epsilon=float(epsilon), loss_weight=float(loss_weight),
        binary_target=bool(binary_target))

    # NOTE: when n % tile_n != 0 the padded rows of the last row block compute
    # on garbage input; that is safe only because Pallas discards the
    # out-of-range rows of the partial (tile_n, 1) output block on writeback.
    loss_rows = pl.pallas_call(
        kernel,
        out_shape=jax.ShapeDtypeStruct((n, 1), jnp.float32),
        grid_spec=pltpu.PrefetchScalarGridSpec(
            num_scalar_prefetch=0,
            grid=grid,
            in_specs=[
                pl.BlockSpec((tile_n, tile_d), lambda i, k: (i, k)),
                pl.BlockSpec((tile_n, tile_d), lambda i, k: (i, k)),
            ],
            out_specs=pl.BlockSpec((tile_n, 1), lambda i, k: (i, 0)),
            scratch_shapes=[
                pltpu.VMEM((tile_n, 128), jnp.float32),   # numerator acc
                pltpu.VMEM((tile_n, 128), jnp.float32),   # denominator acc
            ],
        ),
        compiler_params=pltpu.CompilerParams(
            dimension_semantics=("parallel", "arbitrary"),
            vmem_limit_bytes=vmem_limit),
    )(pred, target)

    # Scalar/vector glue (per-row weight, sum over rows, avg_factor) in JAX.
    loss = loss_rows[:, 0]
    if weight is not None:
        loss = loss * weight.astype(loss.dtype)
    total = jnp.sum(loss)
    if reduction == 'mean' and avg_factor is not None:
        return total / avg_factor
    return total


def _dice_loss_ref(pred, target, weight=None, avg_factor=None, *,
                   reduction='mean', loss_weight=1.0, epsilon=0.001):
    p = jax.nn.sigmoid(pred.astype(jnp.float32))
    t = target.astype(jnp.float32)
    dice = 2 * jnp.sum(p * t, 1) / (jnp.sum(p * p, 1) + jnp.sum(t * t, 1) + epsilon)
    loss = (1 - dice) * loss_weight
    if weight is not None:
        loss = loss * weight
    total = loss.sum()
    if reduction == 'mean' and avg_factor is not None:
        return total / avg_factor
    return total


if __name__ == "__main__":
    key = jax.random.PRNGKey(0)
    k1, k2, k3 = jax.random.split(key, 3)

    # num_masks = 8, flattened spatial size = 16*16 = 256
    N, D = 8, 256
    pred = jax.random.normal(k1, (N, D), dtype=jnp.float32)
    target = (jax.random.uniform(k2, (N, D)) > 0.5).astype(jnp.float32)
    weight = jax.random.uniform(k3, (N,), dtype=jnp.float32)

    # 1) default: reduction='mean', no weight, no avg_factor -> plain sum
    out = jax.block_until_ready(dice_loss(pred, target))
    ref = _dice_loss_ref(pred, target)
    assert jnp.allclose(out, ref, rtol=1e-5, atol=1e-5), (out, ref)

    # 2) per-mask weight + avg_factor
    out_w = jax.block_until_ready(
        dice_loss(pred, target, weight=weight, avg_factor=4.0))
    ref_w = _dice_loss_ref(pred, target, weight=weight, avg_factor=4.0)
    assert jnp.allclose(out_w, ref_w, rtol=1e-5, atol=1e-5), (out_w, ref_w)

    # 3) ragged D (not a multiple of 128) with a forced small tile:
    #    exercises the per-chunk ragged masking and multi-step D accumulation.
    D2 = 200
    pred2, target2 = pred[:, :D2], target[:, :D2]
    out_r = jax.block_until_ready(
        dice_loss(pred2, target2, weight=weight, avg_factor=3.0, tile_d=128))
    ref_r = _dice_loss_ref(pred2, target2, weight=weight, avg_factor=3.0)
    assert jnp.allclose(out_r, ref_r, rtol=1e-5, atol=1e-5), (out_r, ref_r)

    # 4) bf16 pred + int8 binary target (3 bytes/elem HBM), f32 accumulation,
    #    binary-target path.
    out_b = jax.block_until_ready(
        dice_loss(pred.astype(jnp.bfloat16), target.astype(jnp.int8),
                  binary_target=True))
    ref_b = _dice_loss_ref(pred.astype(jnp.bfloat16), target.astype(jnp.int8))
    assert jnp.allclose(out_b, ref_b, rtol=1e-5, atol=1e-5), (out_b, ref_b)

    print("KERNEL_OK")
</pallas_src>

<mosaic_0001>
module attributes {stable_mosaic.version = 11 : i64} {
  func.func @_dice_loss_kernel(%arg0: i32, %arg1: i32, %arg2: memref<8x256xf32, #tpu.memory_space<vmem>>, %arg3: memref<8x256xf32, #tpu.memory_space<vmem>>, %arg4: memref<8x1xf32, #tpu.memory_space<vmem>>, %arg5: memref<8x128xf32, #tpu.memory_space<vmem>>, %arg6: memref<8x128xf32, #tpu.memory_space<vmem>>) attributes {dimension_semantics = [#tpu.dimension_semantics<parallel>, #tpu.dimension_semantics<arbitrary>], iteration_bounds = array<i64: 1, 1>, scalar_prefetch = 0 : i64, scratch_operands = 2 : i64, tpu.core_type = #tpu.core_type<tc>, window_params = [{transform_indices = @transform_0, window_bounds = array<i64: 8, 256>}, {transform_indices = @transform_1, window_bounds = array<i64: 8, 256>}, {transform_indices = @transform_2, window_bounds = array<i64: 8, 1>}]} {
    %c0_i32 = arith.constant 0 : i32
    %0 = arith.cmpi eq, %arg1, %c0_i32 : i32
    %1 = arith.extui %0 : i1 to i32
    %c0_i32_0 = arith.constant 0 : i32
    %2 = arith.cmpi ne, %1, %c0_i32_0 : i32
    scf.if %2 {
      %cst_24 = arith.constant 0.000000e+00 : f32
      %44 = vector.broadcast %cst_24 : f32 to vector<8x128xf32>
      %c0_25 = arith.constant 0 : index
      %c0_26 = arith.constant 0 : index
      %45 = vector.load %arg5[%c0_25, %c0_26] : memref<8x128xf32, #tpu.memory_space<vmem>>, vector<8x128xf32>
      tpu.vector_store %arg5[%c0_25, %c0_26], %44 {strides = array<i32>} : memref<8x128xf32, #tpu.memory_space<vmem>>, vector<8x128xf32>,
      %cst_27 = arith.constant 0.000000e+00 : f32
      %46 = vector.broadcast %cst_27 : f32 to vector<8x128xf32>
      %c0_28 = arith.constant 0 : index
      %c0_29 = arith.constant 0 : index
      %47 = vector.load %arg6[%c0_28, %c0_29] : memref<8x128xf32, #tpu.memory_space<vmem>>, vector<8x128xf32>
      tpu.vector_store %arg6[%c0_28, %c0_29], %46 {strides = array<i32>} : memref<8x128xf32, #tpu.memory_space<vmem>>, vector<8x128xf32>,
    } else {
    }
    %cst = arith.constant 0.000000e+00 : f32
    %3 = vector.broadcast %cst : f32 to vector<8x128xf32>
    %cst_1 = arith.constant 0.000000e+00 : f32
    %4 = vector.broadcast %cst_1 : f32 to vector<8x128xf32>
    %c0 = arith.constant 0 : index
    %c0_2 = arith.constant 0 : index
    %5 = vector.load %arg2[%c0, %c0_2] : memref<8x256xf32, #tpu.memory_space<vmem>>, vector<8x128xf32>
    %cst_3 = arith.constant 5.000000e-01 : f32
    %6 = vector.broadcast %cst_3 : f32 to vector<8x128xf32>
    %7 = arith.mulf %6, %5 : vector<8x128xf32>
    %8 = math.tanh %7 : vector<8x128xf32>
    %cst_4 = arith.constant 5.000000e-01 : f32
    %9 = vector.broadcast %cst_4 : f32 to vector<8x128xf32>
    %10 = arith.mulf %9, %8 : vector<8x128xf32>
    %cst_5 = arith.constant 5.000000e-01 : f32
    %11 = vector.broadcast %cst_5 : f32 to vector<8x128xf32>
    %12 = arith.addf %10, %11 : vector<8x128xf32>
    %c0_6 = arith.constant 0 : index
    %c0_7 = arith.constant 0 : index
    %13 = vector.load %arg3[%c0_6, %c0_7] : memref<8x256xf32, #tpu.memory_space<vmem>>, vector<8x128xf32>
    %14 = arith.mulf %12, %13 : vector<8x128xf32>
    %15 = arith.addf %3, %14 : vector<8x128xf32>
    %16 = arith.mulf %12, %12 : vector<8x128xf32>
    %17 = arith.addf %4, %16 : vector<8x128xf32>
    %18 = arith.mulf %13, %13 : vector<8x128xf32>
    %19 = arith.addf %17, %18 : vector<8x128xf32>
    %c0_8 = arith.constant 0 : index
    %c128 = arith.constant 128 : index
    %20 = vector.load %arg2[%c0_8, %c128] : memref<8x256xf32, #tpu.memory_space<vmem>>, vector<8x128xf32>
    %cst_9 = arith.constant 5.000000e-01 : f32
    %21 = vector.broadcast %cst_9 : f32 to vector<8x128xf32>
    %22 = arith.mulf %21, %20 : vector<8x128xf32>
    %23 = math.tanh %22 : vector<8x128xf32>
    %cst_10 = arith.constant 5.000000e-01 : f32
    %24 = vector.broadcast %cst_10 : f32 to vector<8x128xf32>
    %25 = arith.mulf %24, %23 : vector<8x128xf32>
    %cst_11 = arith.constant 5.000000e-01 : f32
    %26 = vector.broadcast %cst_11 : f32 to vector<8x128xf32>
    %27 = arith.addf %25, %26 : vector<8x128xf32>
    %c0_12 = arith.constant 0 : index
    %c128_13 = arith.constant 128 : index
    %28 = vector.load %arg3[%c0_12, %c128_13] : memref<8x256xf32, #tpu.memory_space<vmem>>, vector<8x128xf32>
    %29 = arith.mulf %27, %28 : vector<8x128xf32>
    %30 = arith.addf %15, %29 : vector<8x128xf32>
    %31 = arith.mulf %27, %27 : vector<8x128xf32>
    %32 = arith.addf %19, %31 : vector<8x128xf32>
    %33 = arith.mulf %28, %28 : vector<8x128xf32>
    %34 = arith.addf %32, %33 : vector<8x128xf32>
    %c0_14 = arith.constant 0 : index
    %c0_15 = arith.constant 0 : index
    %35 = vector.load %arg5[%c0_14, %c0_15] : memref<8x128xf32, #tpu.memory_space<vmem>>, vector<8x128xf32>
    %36 = arith.addf %35, %30 : vector<8x128xf32>
    %c0_16 = arith.constant 0 : index
    %c0_17 = arith.constant 0 : index
    %37 = vector.load %arg5[%c0_16, %c0_17] : memref<8x128xf32, #tpu.memory_space<vmem>>, vector<8x128xf32>
    tpu.vector_store %arg5[%c0_16, %c0_17], %36 {strides = array<i32>} : memref<8x128xf32, #tpu.memory_space<vmem>>, vector<8x128xf32>,
    %c0_18 = arith.constant 0 : index
    %c0_19 = arith.constant 0 : index
    %38 = vector.load %arg6[%c0_18, %c0_19] : memref<8x128xf32, #tpu.memory_space<vmem>>, vector<8x128xf32>
    %39 = arith.addf %38, %34 : vector<8x128xf32>
    %c0_20 = arith.constant 0 : index
    %c0_21 = arith.constant 0 : index
    %40 = vector.load %arg6[%c0_20, %c0_21] : memref<8x128xf32, #tpu.memory_space<vmem>>, vector<8x128xf32>
    tpu.vector_store %arg6[%c0_20, %c0_21], %39 {strides = array<i32>} : memref<8x128xf32, #tpu.memory_space<vmem>>, vector<8x128xf32>,
    %c0_i32_22 = arith.constant 0 : i32
    %41 = arith.cmpi eq, %arg1, %c0_i32_22 : i32
    %42 = arith.extui %41 : i1 to i32
    %c0_i32_23 = arith.constant 0 : i32
    %43 = arith.cmpi ne, %42, %c0_i32_23 : i32
    scf.if %43 {
      %c0_24 = arith.constant 0 : index
      %c0_25 = arith.constant 0 : index
      %44 = vector.load %arg5[%c0_24, %c0_25] : memref<8x128xf32, #tpu.memory_space<vmem>>, vector<8x128xf32>
      %cst_26 = arith.constant dense<0.000000e+00> : vector<8xf32>
      %45 = vector.multi_reduction <add>, %44, %cst_26 [1] : vector<8x128xf32> to vector<8xf32>
      %46 = vector.shape_cast %45 : vector<8xf32> to vector<8x1xf32>
      %c0_27 = arith.constant 0 : index
      %c0_28 = arith.constant 0 : index
      %47 = vector.load %arg6[%c0_27, %c0_28] : memref<8x128xf32, #tpu.memory_space<vmem>>, vector<8x128xf32>
      %cst_29 = arith.constant dense<0.000000e+00> : vector<8xf32>
      %48 = vector.multi_reduction <add>, %47, %cst_29 [1] : vector<8x128xf32> to vector<8xf32>
      %49 = vector.shape_cast %48 : vector<8xf32> to vector<8x1xf32>
      %cst_30 = arith.constant 2.000000e+00 : f32
      %50 = vector.broadcast %cst_30 : f32 to vector<8x1xf32>
      %51 = arith.mulf %50, %46 : vector<8x1xf32>
      %cst_31 = arith.constant 1.000000e-03 : f32
      %52 = vector.broadcast %cst_31 : f32 to vector<8x1xf32>
      %53 = arith.addf %49, %52 : vector<8x1xf32>
      %54 = arith.divf %51, %53 : vector<8x1xf32>
      %cst_32 = arith.constant 1.000000e+00 : f32
      %55 = vector.broadcast %cst_32 : f32 to vector<8x1xf32>
      %56 = arith.subf %55, %54 : vector<8x1xf32>
      %cst_33 = arith.constant 1.000000e+00 : f32
      %57 = vector.broadcast %cst_33 : f32 to vector<8x1xf32>
      %58 = arith.mulf %56, %57 : vector<8x1xf32>
      %c0_34 = arith.constant 0 : index
      %c0_35 = arith.constant 0 : index
      %59 = vector.load %arg4[%c0_34, %c0_35] : memref<8x1xf32, #tpu.memory_space<vmem>>, vector<8x1xf32>
      tpu.vector_store %arg4[%c0_34, %c0_35], %58 {strides = array<i32>} : memref<8x1xf32, #tpu.memory_space<vmem>>, vector<8x1xf32>,
    } else {
    }
    return
  }
  func.func @transform_0(%arg0: i32, %arg1: i32) -> (i32, i32) {
    %c0_i32 = arith.constant 0 : i32
    return %arg0, %arg1 : i32, i32
  }
  func.func @transform_1(%arg0: i32, %arg1: i32) -> (i32, i32) {
    %c0_i32 = arith.constant 0 : i32
    return %arg0, %arg1 : i32, i32
  }
  func.func @transform_2(%arg0: i32, %arg1: i32) -> (i32, i32) {
    %c0_i32 = arith.constant 0 : i32
    %c0_i32_0 = arith.constant 0 : i32
    return %arg0, %c0_i32 : i32, i32
  }
}

</mosaic_0001>

<llo_original>
// kernel: tpu_custom_call.1
$region0: #{tpu_custom_call.1}
  #allocation0 [shape = 'u32[]', space=smem, size = 0x4, offset = 0x4, fixed_abs, tag = 'smem constant byte address 0x4 - core index']
  #allocation1 [shape = 'u32[144,128]{1,0:T(1,128)}', space=vmem, size = 0x12000, scoped, tag = 'internal scratch']
  #allocation2 [shape = 'f32[8,128]{1,0:T(8,128)}', space=vmem, size = 0x1000, scoped, tag = 'scratch operand']
  #allocation3 [shape = 'f32[8,128]{1,0:T(8,128)}', space=vmem, size = 0x1000, scoped, tag = 'scratch operand']
  %s0 = inlined_call_operand.hbm [shape: f32[8,256], index: 0, kind: input, shape index: {}]
  %s1 = inlined_call_operand.hbm [shape: f32[8,256], index: 1, kind: input, shape index: {}]
  %s2 = inlined_call_operand.vmem [shape: f32[8,1], index: 2, kind: output, shape index: {}]
  %s3 = sld [smem:[#allocation0]]
  $region34: #{tpu_custom_call.1} parent=0
    _
  %s5 = ssub.s32 1, %s3
  %s6 = scalar_select 0, %s5, %s3
  $region1: #{tpu_custom_call.1} parent=0
    #allocation4 [shape = 'u8[8192]{0}', space=vmem, size = 0x2000, scoped, tag = 'input window, operand 0, single buffered']
    #allocation5 [shape = 's32[1]{0}', space=sflag, size = 0x4, scoped, tag = 'scoped memory for tpu_custom_call.1']
    #allocation6 [shape = 'u8[8192]{0}', space=vmem, size = 0x2000, scoped, tag = 'input window, operand 1, single buffered']
    #allocation7 [shape = 's32[1]{0}', space=sflag, size = 0x4, scoped, tag = 'scoped memory for tpu_custom_call.1']
    %7 = vsyncpa [#allocation5], 0
    %8 = vsyncpa [#allocation7], 0
    // Predicated region
    $region2: #{tpu_custom_call.1} parent=1 // pred_check
      _
    $region3: #{tpu_custom_call.1} parent=1 // pred_check_branch
      %10 = sbr.rel (0) target = $region5
    $region4: #{tpu_custom_call.1} parent=1 // pred_region
      %s12 = ssub.s32 256, 256
      %13 = vsyncadd [#allocation5], %s12
      %s15 = sshll.u32 [#allocation4], 4
      %s16 = int_to_ptr.vmem [resolvable:$true] %s15
      %18 = dma.hbm_to_vmem [thread:$0]  %s0, 256, %s16, [#allocation5]
    $region5: #{tpu_custom_call.1} parent=1 // pred_fallthru
      _
    // Predicated region
    $region6: #{tpu_custom_call.1} parent=1 // pred_check
      _
    $region7: #{tpu_custom_call.1} parent=1 // pred_check_branch
      %20 = sbr.rel (0) target = $region9
    $region8: #{tpu_custom_call.1} parent=1 // pred_region
      %s22 = ssub.s32 256, 256
      %23 = vsyncadd [#allocation7], %s22
      %s25 = sshll.u32 [#allocation6], 4
      %s26 = int_to_ptr.vmem [resolvable:$true] %s25
      %28 = dma.hbm_to_vmem [thread:$0]  %s1, 256, %s26, [#allocation7]
    $region9: #{tpu_custom_call.1} parent=1 // pred_fallthru
      _
    // Predicated region
    $region10: #{tpu_custom_call.1} parent=1 // pred_check
      _
    $region11: #{tpu_custom_call.1} parent=1 // pred_check_branch
      %30 = sbr.rel (0) target = $region13
    $region12: #{tpu_custom_call.1} parent=1 // pred_region
      %31 = dma.done [#allocation5], 256
    $region13: #{tpu_custom_call.1} parent=1 // pred_fallthru
      _
    // Predicated region
    $region14: #{tpu_custom_call.1} parent=1 // pred_check
      _
    $region15: #{tpu_custom_call.1} parent=1 // pred_check_branch
      %33 = sbr.rel (0) target = $region17
    $region16: #{tpu_custom_call.1} parent=1 // pred_region
      %34 = dma.done [#allocation7], 256
    $region17: #{tpu_custom_call.1} parent=1 // pred_fallthru
      _
    %p35 = scmp.eq.s32.totalorder 0, 0
    // Predicated region
    $region18: #{tpu_custom_call.1} parent=1 // pred_check
      %p36 = pneg %p35
    $region19: #{tpu_custom_call.1} parent=1 // pred_check_branch
      %38 = sbr.rel (%p36) target = $region21
    $region20: #{tpu_custom_call.1} parent=1 // pred_region
      %39 = vst [vmem:[#allocation2] sm:$0xff] 0.0
      %40 = vst [vmem:[#allocation3] sm:$0xff] 0.0
    $region21: #{tpu_custom_call.1} parent=1 // pred_fallthru
      _
    %v41 = vld [vmem:[#allocation4] sm:$0xff]
    %v42 = vmul.f32 %v41, 0.5
    %v43 = vtanh.pop %v42
    %v44 = vmul.f32 %v43, 0.5
    %v45 = vadd.f32 %v44, 0.5
    %v46 = vld [vmem:[#allocation6] sm:$0xff]
    %v47 = vmul.f32 %v45, %v46
    %v48 = vadd.f32 %v47, 0.0
    %v49 = vmul.f32 %v45, %v45
    %v50 = vadd.f32 %v49, 0.0
    %v51 = vmul.f32 %v46, %v46
    %v52 = vadd.f32 %v50, %v51
    %v53 = vld [vmem:[#allocation4 + $0x8] sm:$0xff]
    %v54 = vmul.f32 %v53, 0.5
    %v55 = vtanh.pop %v54
    %v56 = vmul.f32 %v55, 0.5
    %v57 = vadd.f32 %v56, 0.5
    %v58 = vld [vmem:[#allocation6 + $0x8] sm:$0xff]
    %v59 = vmul.f32 %v57, %v58
    %v60 = vadd.f32 %v48, %v59
    %v61 = vmul.f32 %v57, %v57
    %v62 = vadd.f32 %v52, %v61
    %v63 = vmul.f32 %v58, %v58
    %v64 = vadd.f32 %v62, %v63
    %v65 = vld [vmem:[#allocation2] sm:$0xff]
    %v66 = vadd.f32 %v65, %v60
    %67 = vst [vmem:[#allocation2] sm:$0xff] %v66
    %v68 = vld [vmem:[#allocation3] sm:$0xff]
    %v69 = vadd.f32 %v68, %v64
    %70 = vst [vmem:[#allocation3] sm:$0xff] %v69
    // Predicated region
    $region22: #{tpu_custom_call.1} parent=1 // pred_check
      %p71 = pneg %p35
    $region23: #{tpu_custom_call.1} parent=1 // pred_check_branch
      %73 = sbr.rel (%p71) target = $region25
    $region24: #{tpu_custom_call.1} parent=1 // pred_region
      %v74 = vld [vmem:[#allocation2] sm:$0xff]
      %75 = vadd.xlane.f32.xlu0 %v74
      %v76 = vpop.xlane.xlu0 %75
      %v77 = vld [vmem:[#allocation3] sm:$0xff]
      %78 = vadd.xlane.f32.xlu0 %v77
      %v79 = vpop.xlane.xlu0 %78
      %v80 = vmul.f32 %v76, 2.0
      %v81 = vadd.f32 %v79, 0.001
      %v82 = vrcp.pop %v81
      %v83 = vmul.f32 %v80, %v82
      %v84 = vsub.f32 1.0, %v83
      %vm85 = vcmask 7168
      %86 = vst.msk [vmem:[%s2] sm:$0xff] %vm85, %v84
    $region25: #{tpu_custom_call.1} parent=1 // pred_fallthru
      _
    // Predicated region
    $region26: #{tpu_custom_call.1} parent=1 // pred_check
      _
    $region27: #{tpu_custom_call.1} parent=1 // pred_check_branch
      %88 = sbr.rel (0) target = $region29
    $region28: #{tpu_custom_call.1} parent=1 // pred_region
      _
    $region29: #{tpu_custom_call.1} parent=1 // pred_fallthru
      _
    // Predicated region
    $region30: #{tpu_custom_call.1} parent=1 // pred_check
      _
    $region31: #{tpu_custom_call.1} parent=1 // pred_check_branch
      %90 = sbr.rel (0) target = $region33
    $region32: #{tpu_custom_call.1} parent=1 // pred_region
      _
    $region33: #{tpu_custom_call.1} parent=1 // pred_fallthru
      _
    %91 = vsyncpa [#allocation5], 1
    %92 = vsyncpa [#allocation7], 1

</llo_original>
